<compile_context>
chip_gen: v5e
topology: v5e:2x2
jax: 0.10.0
libtpu: 0.0.40
codegen_flags: <defaults>
</compile_context>

<pallas_src>
import jax
import jax.numpy as jnp
from jax.experimental import pallas as pl
from jax.experimental.pallas import tpu as pltpu

HIDDEN1 = 128      # first hidden width (already lane-dense)
HIDDEN2 = 64       # logical second hidden width (PyTorch spec)
HIDDEN2_PAD = 128  # second hidden width padded to a full 128-lane vreg
OUT_PAD = 128      # lane-padded width of the *resident* W3 / bias slabs only


def _cdiv(a, b):
    return (a + b - 1) // b


def _round_up(x, m):
    return _cdiv(x, m) * m


def dqn_kernel(x_ref, w1_ref, w2_ref, w3_ref, b_ref, o_ref):
    """Fused 3-layer MLP on one batch tile.

    x_ref : (tile_b, state_dim) f32       raw input rows, cast to compute dtype here
    w1_ref: (state_dim, 128)    bf16/f32
    w2_ref: (128, 128)          bf16/f32  cols [64:] are zero
    w3_ref: (128, 128)          bf16/f32  rows [64:] and cols [action_dim:] are zero
    b_ref : (8, 128)            f32       row0=b1, row1=b2 (pad), row2=b3 (pad)
    o_ref : (tile_b, action_dim) f32      narrow, lane-masked store
    """
    cdt = w1_ref.dtype
    x = x_ref[...].astype(cdt)            # in-kernel cast: free VPU op, saves an HBM pass
    b = b_ref[...]
    b1, b2, b3 = b[0:1, :], b[1:2, :], b[2:3, :]

    # Matmuls on the MXU with f32 accumulation; bias add + ReLU in f32 on the VPU.
    h1 = jnp.dot(x, w1_ref[...], preferred_element_type=jnp.float32) + b1
    h1 = jnp.maximum(h1, 0.0)
    h2 = jnp.dot(h1.astype(cdt), w2_ref[...], preferred_element_type=jnp.float32) + b2
    h2 = jnp.maximum(h2, 0.0)
    out = jnp.dot(h2.astype(cdt), w3_ref[...], preferred_element_type=jnp.float32) + b3

    # Store only the valid action_dim columns (narrow output, masked store).
    o_ref[...] = out[:, :o_ref.shape[-1]].astype(o_ref.dtype)


def pack_params(params, compute_dtype=jnp.bfloat16):
    """Zero-padded, lane-dense weight/bias slabs.

    Weights are stored (in_features, out_features) -- transposed vs. PyTorch -- so the
    kernel computes y = x @ W + b (== x @ W_pt.T + b).  Pad rows/cols/biases are zero,
    so the padded arithmetic equals the unpadded arithmetic exactly (ReLU(0) = 0).
    """
    action_dim = params["W3"].shape[1]

    w1p = params["W1"].astype(compute_dtype)                      # (state_dim, 128)
    w2p = (jnp.zeros((HIDDEN1, HIDDEN2_PAD), jnp.float32)
           .at[:, :HIDDEN2].set(params["W2"]).astype(compute_dtype))
    w3p = (jnp.zeros((HIDDEN2_PAD, OUT_PAD), jnp.float32)
           .at[:HIDDEN2, :action_dim].set(params["W3"]).astype(compute_dtype))

    b_slab = jnp.zeros((8, OUT_PAD), jnp.float32)
    b_slab = b_slab.at[0, :HIDDEN1].set(params["b1"].reshape(-1))
    b_slab = b_slab.at[1, :HIDDEN2].set(params["b2"].reshape(-1))
    b_slab = b_slab.at[2, :action_dim].set(params["b3"].reshape(-1))
    return w1p, w2p, w3p, b_slab, action_dim


def dqn_forward(x, params, *, tile_b=512, compute_dtype=jnp.bfloat16):
    """x: (B, state_dim) f32; params: dict of W1,b1,W2,b2,W3,b3 in (in,out) layout."""
    B, state_dim = x.shape
    w1, w2, w3, b_slab, action_dim = pack_params(params, compute_dtype)

    # Batch tile: multiple of 8, as large as the batch allows (amortize per-step
    # overhead), but keep >= 2 grid steps when possible so v7x's 2 TensorCores both
    # get work under dimension_semantics=("parallel",).
    if B <= 8:
        tb = B                                        # block == full batch dim
    else:
        tb = max(8, min(_round_up(tile_b, 8), _round_up(B, 8), 2048))
        if _cdiv(B, tb) == 1:                         # single tile -> split for megacore
            tb = _round_up(_cdiv(B, 2), 8)
    n_tiles = _cdiv(B, tb)

    w_items = jnp.dtype(compute_dtype).itemsize
    flops = 2 * B * (state_dim * HIDDEN1 + HIDDEN1 * HIDDEN2_PAD + HIDDEN2_PAD * OUT_PAD)
    bytes_accessed = (B * state_dim * x.dtype.itemsize                       # x in (f32)
                      + (state_dim * HIDDEN1 + HIDDEN1 * HIDDEN2_PAD
                         + HIDDEN2_PAD * OUT_PAD) * w_items                  # resident weights
                      + 8 * OUT_PAD * 4                                      # bias slab
                      + B * action_dim * 4)                                  # narrow f32 out

    return pl.pallas_call(
        dqn_kernel,
        out_shape=jax.ShapeDtypeStruct((B, action_dim), jnp.float32),
        grid=(n_tiles,),
        in_specs=[
            pl.BlockSpec((tb, state_dim), lambda i: (i, 0)),          # x: batch-tiled
            pl.BlockSpec((state_dim, HIDDEN1), lambda i: (0, 0)),     # W1: VMEM-resident
            pl.BlockSpec((HIDDEN1, HIDDEN2_PAD), lambda i: (0, 0)),   # W2: VMEM-resident
            pl.BlockSpec((HIDDEN2_PAD, OUT_PAD), lambda i: (0, 0)),   # W3: VMEM-resident
            pl.BlockSpec((8, OUT_PAD), lambda i: (0, 0)),             # biases
        ],
        out_specs=pl.BlockSpec((tb, action_dim), lambda i: (i, 0)),   # narrow output
        compiler_params=pltpu.CompilerParams(
            dimension_semantics=("parallel",)),                       # batch over TCs (v7x)
        cost_estimate=pl.CostEstimate(
            flops=flops, transcendentals=0, bytes_accessed=bytes_accessed),
    )(x, w1, w2, w3, b_slab)


def init_params(key, state_dim, action_dim):
    """Deterministic init mimicking PyTorch nn.Linear default (uniform +/- 1/sqrt(fan_in))."""
    dims = [(state_dim, HIDDEN1), (HIDDEN1, HIDDEN2), (HIDDEN2, action_dim)]
    params = {}
    for i, (fan_in, fan_out) in enumerate(dims, start=1):
        key, kw, kb = jax.random.split(key, 3)
        bound = 1.0 / jnp.sqrt(fan_in)
        params[f"W{i}"] = jax.random.uniform(kw, (fan_in, fan_out), jnp.float32,
                                             minval=-bound, maxval=bound)
        params[f"b{i}"] = jax.random.uniform(kb, (1, fan_out), jnp.float32,
                                             minval=-bound, maxval=bound)
    return params


def dqn_reference(x, params, compute_dtype=jnp.float32):
    """Pure-JAX reference. compute_dtype mirrors the kernel's matmul-input precision."""
    def mm(a, w):
        return jnp.dot(a.astype(compute_dtype), w.astype(compute_dtype),
                       preferred_element_type=jnp.float32)
    h1 = jnp.maximum(mm(x, params["W1"]) + params["b1"], 0.0)
    h2 = jnp.maximum(mm(h1, params["W2"]) + params["b2"], 0.0)
    return mm(h2, params["W3"]) + params["b3"]


if __name__ == "__main__":
    key = jax.random.PRNGKey(0)
    batch, state_dim, action_dim = 256, 16, 4   # small shapes; grid splits into 2 batch tiles

    key, kx = jax.random.split(key)
    x = jax.random.normal(kx, (batch, state_dim), jnp.float32)
    params = init_params(key, state_dim, action_dim)

    out = jax.block_until_ready(dqn_forward(x, params))
    assert out.shape == (batch, action_dim), out.shape

    # Reference mirroring the kernel's arithmetic (bf16 matmul inputs, f32 accumulate).
    ref_bf16 = dqn_reference(x, params, compute_dtype=jnp.bfloat16)
    assert jnp.allclose(out, ref_bf16, atol=1e-4, rtol=1e-4), "mismatch vs bf16 reference"

    # Full-f32 reference: bf16 matmul inputs keep agreement within bf16 precision.
    ref_f32 = dqn_reference(x, params, compute_dtype=jnp.float32)
    assert jnp.allclose(out, ref_f32, atol=5e-2, rtol=5e-2), "mismatch vs f32 reference"

    print("KERNEL_OK")
</pallas_src>

<mosaic_0001>
module attributes {stable_mosaic.version = 11 : i64} {
  func.func @dqn_kernel(%arg0: i32, %arg1: memref<128x16xf32, #tpu.memory_space<vmem>>, %arg2: memref<16x128xbf16, #tpu.memory_space<vmem>>, %arg3: memref<128x128xbf16, #tpu.memory_space<vmem>>, %arg4: memref<128x128xbf16, #tpu.memory_space<vmem>>, %arg5: memref<8x128xf32, #tpu.memory_space<vmem>>, %arg6: memref<128x4xf32, #tpu.memory_space<vmem>>) attributes {dimension_semantics = [#tpu.dimension_semantics<parallel>], iteration_bounds = array<i64: 2>, scalar_prefetch = 0 : i64, scratch_operands = 0 : i64, tpu.core_type = #tpu.core_type<tc>, window_params = [{transform_indices = @transform_0, window_bounds = array<i64: 128, 16>}, {pipeline_mode = #tpu.pipeline_mode<synchronous>, transform_indices = @transform_1, window_bounds = array<i64: 16, 128>}, {pipeline_mode = #tpu.pipeline_mode<synchronous>, transform_indices = @transform_2, window_bounds = array<i64: 128, 128>}, {pipeline_mode = #tpu.pipeline_mode<synchronous>, transform_indices = @transform_3, window_bounds = array<i64: 128, 128>}, {pipeline_mode = #tpu.pipeline_mode<synchronous>, transform_indices = @transform_4, window_bounds = array<i64: 8, 128>}, {transform_indices = @transform_5, window_bounds = array<i64: 128, 4>}]} {
    %c0 = arith.constant 0 : index
    %c0_0 = arith.constant 0 : index
    %0 = vector.load %arg1[%c0, %c0_0] : memref<128x16xf32, #tpu.memory_space<vmem>>, vector<128x16xf32>
    %1 = arith.truncf %0 : vector<128x16xf32> to vector<128x16xbf16>
    %c0_1 = arith.constant 0 : index
    %c0_2 = arith.constant 0 : index
    %2 = vector.load %arg5[%c0_1, %c0_2] : memref<8x128xf32, #tpu.memory_space<vmem>>, vector<8x128xf32>
    %3 = vector.extract_strided_slice %2 {offsets = [0, 0], sizes = [1, 128], strides = [1, 1]} : vector<8x128xf32> to vector<1x128xf32>
    %4 = vector.extract_strided_slice %2 {offsets = [1, 0], sizes = [1, 128], strides = [1, 1]} : vector<8x128xf32> to vector<1x128xf32>
    %5 = vector.extract_strided_slice %2 {offsets = [2, 0], sizes = [1, 128], strides = [1, 1]} : vector<8x128xf32> to vector<1x128xf32>
    %c0_3 = arith.constant 0 : index
    %c0_4 = arith.constant 0 : index
    %6 = vector.load %arg2[%c0_3, %c0_4] : memref<16x128xbf16, #tpu.memory_space<vmem>>, vector<16x128xbf16>
    %cst = arith.constant dense<0.000000e+00> : vector<128x128xf32>
    %7 = tpu.matmul %1, %6, %cst {dimension_numbers = #tpu.dot_dimension_numbers<[1], [0], [0], [1], [0, 0, 1, 1], [], []>} : vector<128x16xbf16>, vector<16x128xbf16>, vector<128x128xf32> -> vector<128x128xf32>
    %8 = vector.broadcast %3 : vector<1x128xf32> to vector<128x128xf32>
    %9 = arith.addf %7, %8 : vector<128x128xf32>
    %cst_5 = arith.constant 0.000000e+00 : f32
    %10 = vector.broadcast %cst_5 : f32 to vector<128x128xf32>
    %11 = arith.maximumf %9, %10 : vector<128x128xf32>
    %12 = arith.truncf %11 : vector<128x128xf32> to vector<128x128xbf16>
    %c0_6 = arith.constant 0 : index
    %c0_7 = arith.constant 0 : index
    %13 = vector.load %arg3[%c0_6, %c0_7] : memref<128x128xbf16, #tpu.memory_space<vmem>>, vector<128x128xbf16>
    %cst_8 = arith.constant dense<0.000000e+00> : vector<128x128xf32>
    %14 = tpu.matmul %12, %13, %cst_8 {dimension_numbers = #tpu.dot_dimension_numbers<[1], [0], [0], [1], [0, 0, 1, 1], [], []>} : vector<128x128xbf16>, vector<128x128xbf16>, vector<128x128xf32> -> vector<128x128xf32>
    %15 = vector.broadcast %4 : vector<1x128xf32> to vector<128x128xf32>
    %16 = arith.addf %14, %15 : vector<128x128xf32>
    %cst_9 = arith.constant 0.000000e+00 : f32
    %17 = vector.broadcast %cst_9 : f32 to vector<128x128xf32>
    %18 = arith.maximumf %16, %17 : vector<128x128xf32>
    %19 = arith.truncf %18 : vector<128x128xf32> to vector<128x128xbf16>
    %c0_10 = arith.constant 0 : index
    %c0_11 = arith.constant 0 : index
    %20 = vector.load %arg4[%c0_10, %c0_11] : memref<128x128xbf16, #tpu.memory_space<vmem>>, vector<128x128xbf16>
    %cst_12 = arith.constant dense<0.000000e+00> : vector<128x128xf32>
    %21 = tpu.matmul %19, %20, %cst_12 {dimension_numbers = #tpu.dot_dimension_numbers<[1], [0], [0], [1], [0, 0, 1, 1], [], []>} : vector<128x128xbf16>, vector<128x128xbf16>, vector<128x128xf32> -> vector<128x128xf32>
    %22 = vector.broadcast %5 : vector<1x128xf32> to vector<128x128xf32>
    %23 = arith.addf %21, %22 : vector<128x128xf32>
    %24 = vector.extract_strided_slice %23 {offsets = [0, 0], sizes = [128, 4], strides = [1, 1]} : vector<128x128xf32> to vector<128x4xf32>
    %c0_13 = arith.constant 0 : index
    %c0_14 = arith.constant 0 : index
    %25 = vector.load %arg6[%c0_13, %c0_14] : memref<128x4xf32, #tpu.memory_space<vmem>>, vector<128x4xf32>
    tpu.vector_store %arg6[%c0_13, %c0_14], %24 {strides = array<i32>} : memref<128x4xf32, #tpu.memory_space<vmem>>, vector<128x4xf32>,
    return
  }
  func.func @transform_0(%arg0: i32) -> (i32, i32) {
    %c0_i32 = arith.constant 0 : i32
    %c0_i32_0 = arith.constant 0 : i32
    return %arg0, %c0_i32 : i32, i32
  }
  func.func @transform_1(%arg0: i32) -> (i32, i32) {
    %c0_i32 = arith.constant 0 : i32
    %c0_i32_0 = arith.constant 0 : i32
    %c0_i32_1 = arith.constant 0 : i32
    return %c0_i32, %c0_i32_0 : i32, i32
  }
  func.func @transform_2(%arg0: i32) -> (i32, i32) {
    %c0_i32 = arith.constant 0 : i32
    %c0_i32_0 = arith.constant 0 : i32
    %c0_i32_1 = arith.constant 0 : i32
    return %c0_i32, %c0_i32_0 : i32, i32
  }
  func.func @transform_3(%arg0: i32) -> (i32, i32) {
    %c0_i32 = arith.constant 0 : i32
    %c0_i32_0 = arith.constant 0 : i32
    %c0_i32_1 = arith.constant 0 : i32
    return %c0_i32, %c0_i32_0 : i32, i32
  }
  func.func @transform_4(%arg0: i32) -> (i32, i32) {
    %c0_i32 = arith.constant 0 : i32
    %c0_i32_0 = arith.constant 0 : i32
    %c0_i32_1 = arith.constant 0 : i32
    return %c0_i32, %c0_i32_0 : i32, i32
  }
  func.func @transform_5(%arg0: i32) -> (i32, i32) {
    %c0_i32 = arith.constant 0 : i32
    %c0_i32_0 = arith.constant 0 : i32
    return %arg0, %c0_i32 : i32, i32
  }
}

</mosaic_0001>

<llo_original>
// kernel: tpu_custom_call.1
$region0: #{tpu_custom_call.1}
  #allocation0 [shape = 'u32[]', space=smem, size = 0x4, offset = 0x4, fixed_abs, tag = 'smem constant byte address 0x4 - core index']
  #allocation1 [shape = 'u32[72,128]{1,0:T(1,128)}', space=vmem, size = 0x9000, scoped, tag = 'internal scratch']
  %s0 = inlined_call_operand.vmem [shape: f32[256,16], index: 0, kind: input, shape index: {}]
  %s1 = inlined_call_operand.vmem [shape: bf16[16,128], index: 1, kind: input, shape index: {}]
  %s2 = inlined_call_operand.vmem [shape: bf16[128,128], index: 2, kind: input, shape index: {}]
  %s3 = inlined_call_operand.vmem [shape: bf16[128,128], index: 3, kind: input, shape index: {}]
  %s4 = inlined_call_operand.vmem [shape: f32[8,128], index: 4, kind: input, shape index: {}]
  %s5 = inlined_call_operand.vmem [shape: f32[256,4], index: 5, kind: output, shape index: {}]
  %s6 = sld [smem:[#allocation0]]
  $region53: #{tpu_custom_call.1} parent=0
    _
  %s8 = ssub.s32 1, %s6
  %s9 = scalar_select 0, %s8, %s6
  loop: start=0, step=1, limit=4
  $region2: #{tpu_custom_call.1} parent=0 // loop_pre_header
    _
  $region3: #{tpu_custom_call.1} parent=0 // loop_header
    %s11 = sphi 0, %s15
    %p12 = scmp.ge.s32.totalorder %s11, 4
    %s21 = sphi 0, %s23
    %s24 = sphi 0, %s21
    %s25 = sphi 0, %s24
    %s41 = sphi 0, %s25
    %s45 = sphi 0, %s45
    %s47 = sphi 0, %s45
    %s48 = sphi 0, %s47
    %s62 = sphi 0, %s48
    %s66 = sphi 0, %s66
    %s68 = sphi 0, %s66
    %s69 = sphi 0, %s68
    %s83 = sphi 0, %s69
    %s87 = sphi 0, %s87
    %s89 = sphi 0, %s87
    %s90 = sphi 0, %s89
    %s104 = sphi 0, %s90
    %s108 = sphi 0, %s108
    %s110 = sphi 0, %s108
    %s111 = sphi 0, %s110
    %s125 = sphi 0, %s111
    %s131 = sphi 0, %s133
    %s134 = sphi 0, %s131
    %s135 = sphi 0, %s134
    %s151 = sphi 0, %s135
  $region4: #{tpu_custom_call.1} parent=0 // loop_header_branch
    %14 = sbr.rel (%p12) target = $region8
  $region5: #{tpu_custom_call.1} parent=0 // loop_body
    %s16 = ssub.s32 %s11, 1
    %s17 = ssub.s32 %s11, 2
    %s18 = sadd.s32 %s11, 1
    %s19 = ssub.s32 %s11, %s18
    %p20 = scmp.eq.s32.totalorder %s19, 0
    %s22 = sadd.s32 %s21, 1
    %s23 = scalar_select %p20, %s21, %s22
    %p26 = pneg %p20
    %p27 = scmp.eq.s32.totalorder %s11, 1
    %p28 = por %p26, %p27
    %p29 = scmp.ne.s32.totalorder %s21, %s24
    %p30 = scmp.eq.s32.totalorder %s11, 0
    %p31 = por %p29, %p30
    %p32 = scmp.ne.s32.totalorder %s21, %s24
    %p33 = scmp.eq.s32.totalorder %s16, 1
    %p34 = por %p32, %p33
    %p35 = scmp.ne.s32.totalorder %s24, %s25
    %p36 = scmp.eq.s32.totalorder %s16, 0
    %p37 = por %p35, %p36
    %p38 = scmp.ne.s32.totalorder %s24, %s25
    %p39 = scmp.eq.s32.totalorder %s17, 1
    %p40 = por %p38, %p39
    %p42 = scmp.ne.s32.totalorder %s25, %s41
    %p43 = scmp.eq.s32.totalorder %s17, 0
    %p44 = por %p42, %p43
    %s46 = sadd.s32 %s45, 1
    %p49 = scmp.eq.s32.totalorder %s11, 1
    %p50 = scmp.ne.s32.totalorder %s45, %s47
    %p51 = scmp.eq.s32.totalorder %s11, 0
    %p52 = por %p50, %p51
    %p53 = scmp.ne.s32.totalorder %s45, %s47
    %p54 = scmp.eq.s32.totalorder %s16, 1
    %p55 = por %p53, %p54
    %p56 = scmp.ne.s32.totalorder %s47, %s48
    %p57 = scmp.eq.s32.totalorder %s16, 0
    %p58 = por %p56, %p57
    %p59 = scmp.ne.s32.totalorder %s47, %s48
    %p60 = scmp.eq.s32.totalorder %s17, 1
    %p61 = por %p59, %p60
    %p63 = scmp.ne.s32.totalorder %s48, %s62
    %p64 = scmp.eq.s32.totalorder %s17, 0
    %p65 = por %p63, %p64
    %s67 = sadd.s32 %s66, 1
    %p70 = scmp.eq.s32.totalorder %s11, 1
    %p71 = scmp.ne.s32.totalorder %s66, %s68
    %p72 = scmp.eq.s32.totalorder %s11, 0
    %p73 = por %p71, %p72
    %p74 = scmp.ne.s32.totalorder %s66, %s68
    %p75 = scmp.eq.s32.totalorder %s16, 1
    %p76 = por %p74, %p75
    %p77 = scmp.ne.s32.totalorder %s68, %s69
    %p78 = scmp.eq.s32.totalorder %s16, 0
    %p79 = por %p77, %p78
    %p80 = scmp.ne.s32.totalorder %s68, %s69
    %p81 = scmp.eq.s32.totalorder %s17, 1
    %p82 = por %p80, %p81
    %p84 = scmp.ne.s32.totalorder %s69, %s83
    %p85 = scmp.eq.s32.totalorder %s17, 0
    %p86 = por %p84, %p85
    %s88 = sadd.s32 %s87, 1
    %p91 = scmp.eq.s32.totalorder %s11, 1
    %p92 = scmp.ne.s32.totalorder %s87, %s89
    %p93 = scmp.eq.s32.totalorder %s11, 0
    %p94 = por %p92, %p93
    %p95 = scmp.ne.s32.totalorder %s87, %s89
    %p96 = scmp.eq.s32.totalorder %s16, 1
    %p97 = por %p95, %p96
    %p98 = scmp.ne.s32.totalorder %s89, %s90
    %p99 = scmp.eq.s32.totalorder %s16, 0
    %p100 = por %p98, %p99
    %p101 = scmp.ne.s32.totalorder %s89, %s90
    %p102 = scmp.eq.s32.totalorder %s17, 1
    %p103 = por %p101, %p102
    %p105 = scmp.ne.s32.totalorder %s90, %s104
    %p106 = scmp.eq.s32.totalorder %s17, 0
    %p107 = por %p105, %p106
    %s109 = sadd.s32 %s108, 1
    %p112 = scmp.eq.s32.totalorder %s11, 1
    %p113 = scmp.ne.s32.totalorder %s108, %s110
    %p114 = scmp.eq.s32.totalorder %s11, 0
    %p115 = por %p113, %p114
    %p116 = scmp.ne.s32.totalorder %s108, %s110
    %p117 = scmp.eq.s32.totalorder %s16, 1
    %p118 = por %p116, %p117
    %p119 = scmp.ne.s32.totalorder %s110, %s111
    %p120 = scmp.eq.s32.totalorder %s16, 0
    %p121 = por %p119, %p120
    %p122 = scmp.ne.s32.totalorder %s110, %s111
    %p123 = scmp.eq.s32.totalorder %s17, 1
    %p124 = por %p122, %p123
    %p126 = scmp.ne.s32.totalorder %s111, %s125
    %p127 = scmp.eq.s32.totalorder %s17, 0
    %p128 = por %p126, %p127
    %s129 = ssub.s32 %s11, %s18
    %p130 = scmp.eq.s32.totalorder %s129, 0
    %s132 = sadd.s32 %s131, 1
    %s133 = scalar_select %p130, %s131, %s132
    %p136 = pneg %p130
    %p137 = scmp.eq.s32.totalorder %s11, 1
    %p138 = por %p136, %p137
    %p139 = scmp.ne.s32.totalorder %s131, %s134
    %p140 = scmp.eq.s32.totalorder %s11, 0
    %p141 = por %p139, %p140
    %p142 = scmp.ne.s32.totalorder %s131, %s134
    %p143 = scmp.eq.s32.totalorder %s16, 1
    %p144 = por %p142, %p143
    %p145 = scmp.ne.s32.totalorder %s134, %s135
    %p146 = scmp.eq.s32.totalorder %s16, 0
    %p147 = por %p145, %p146
    %p148 = scmp.ne.s32.totalorder %s134, %s135
    %p149 = scmp.eq.s32.totalorder %s17, 1
    %p150 = por %p148, %p149
    %p152 = scmp.ne.s32.totalorder %s135, %s151
    %p153 = scmp.eq.s32.totalorder %s17, 0
    %p154 = por %p152, %p153
    %p155 = scmp.le.s32.totalorder 1, %s11
    %p156 = scmp.lt.s32.totalorder %s11, 3
    %p157 = pnand %p155, %p156
    %p158 = pneg %p157
    // Predicated region
    $region9: #{tpu_custom_call.1} parent=5 // pred_check
      _
    $region10: #{tpu_custom_call.1} parent=5 // pred_check_branch
      %160 = sbr.rel (%p157) target = $region12
    $region11: #{tpu_custom_call.1} parent=5 // pred_region
      %s161 = ssub.s32 %s11, 1
      // Predicated region
      $region13: #{tpu_custom_call.1} parent=11 // pred_check
        %p162 = pneg %p58
      $region14: #{tpu_custom_call.1} parent=11 // pred_check_branch
        %164 = sbr.rel (%p162) target = $region16
      $region15: #{tpu_custom_call.1} parent=11 // pred_region
        _
      $region16: #{tpu_custom_call.1} parent=11 // pred_fallthru
        _
      // Predicated region
      $region17: #{tpu_custom_call.1} parent=11 // pred_check
        %p165 = pneg %p79
      $region18: #{tpu_custom_call.1} parent=11 // pred_check_branch
        %167 = sbr.rel (%p165) target = $region20
      $region19: #{tpu_custom_call.1} parent=11 // pred_region
        _
      $region20: #{tpu_custom_call.1} parent=11 // pred_fallthru
        _
      // Predicated region
      $region21: #{tpu_custom_call.1} parent=11 // pred_check
        %p168 = pneg %p100
      $region22: #{tpu_custom_call.1} parent=11 // pred_check_branch
        %170 = sbr.rel (%p168) target = $region24
      $region23: #{tpu_custom_call.1} parent=11 // pred_region
        _
      $region24: #{tpu_custom_call.1} parent=11 // pred_fallthru
        _
      // Predicated region
      $region25: #{tpu_custom_call.1} parent=11 // pred_check
        %p171 = pneg %p121
      $region26: #{tpu_custom_call.1} parent=11 // pred_check_branch
        %173 = sbr.rel (%p171) target = $region28
      $region27: #{tpu_custom_call.1} parent=11 // pred_region
        _
      $region28: #{tpu_custom_call.1} parent=11 // pred_fallthru
        _
    $region12: #{tpu_custom_call.1} parent=5 // pred_fallthru
      _
    %p174 = scmp.lt.s32.totalorder %s11, 2
    // Predicated region
    $region29: #{tpu_custom_call.1} parent=5 // pred_check
      %p175 = pneg %p174
    $region30: #{tpu_custom_call.1} parent=5 // pred_check_branch
      %177 = sbr.rel (%p175) target = $region32
    $region31: #{tpu_custom_call.1} parent=5 // pred_region
      // Predicated region
      $region33: #{tpu_custom_call.1} parent=31 // pred_check
        %p178 = pneg %p31
      $region34: #{tpu_custom_call.1} parent=31 // pred_check_branch
        %180 = sbr.rel (%p178) target = $region36
      $region35: #{tpu_custom_call.1} parent=31 // pred_region
        %s181 = smul.u32 16, %s11
        %p182 = scmp.lt.s32.totalorder %s181, 31
        %s183 = scalar_select %p182, %s181, 31
        %s184 = smul.addr %s183, 8
        %s185 = scalar_lea.vmem %s0, %s184
        %s186 = smul.u32 16, %s11
      $region36: #{tpu_custom_call.1} parent=31 // pred_fallthru
        _
    $region32: #{tpu_custom_call.1} parent=5 // pred_fallthru
      _
    %p187 = scmp.le.s32.totalorder 1, %s11
    %p188 = scmp.lt.s32.totalorder %s11, 3
    %p189 = pnand %p187, %p188
    %p190 = pneg %p189
    // Predicated region
    $region37: #{tpu_custom_call.1} parent=5 // pred_check
      _
    $region38: #{tpu_custom_call.1} parent=5 // pred_check_branch
      %192 = sbr.rel (%p189) target = $region40
    $region39: #{tpu_custom_call.1} parent=5 // pred_region
      %s193 = ssub.s32 %s11, 1
      %s194 = smul.u32 16, %s16
      %p195 = scmp.lt.s32.totalorder %s194, 31
      %s196 = scalar_select %p195, %s194, 31
      %s197 = smul.addr %s196, 8
      %s198 = scalar_lea.vmem %s0, %s197
      %p199 = pneg %p37
      %p200 = pneg %p34
      %p201 = pneg %p58
      %p202 = pneg %p55
      %p203 = pneg %p79
      %p204 = pneg %p76
      %p205 = pneg %p100
      %p206 = pneg %p97
      %p207 = pneg %p121
      %p208 = pneg %p118
      %p209 = pneg %p147
      %p210 = pneg %p144
      %s211 = smul.u32 16, %s16
      %p212 = scmp.lt.s32.totalorder %s211, 31
      %s213 = scalar_select %p212, %s211, 31
      %s214 = smul.addr %s213, 8
      %s215 = scalar_lea.vmem %s5, %s214
      %s216 = smul.u32 16, %s16
      %p217 = scmp.lt.s32.totalorder %s216, 31
      %s218 = scalar_select %p217, %s216, 31
      %s219 = smul.addr %s218, 8
      %s220 = scalar_lea.vmem %s0, %s219
      %s221 = smul.u32 16, %s16
      %s222 = smul.u32 16, %s16
      %p223 = scmp.lt.s32.totalorder %s222, 31
      %s224 = scalar_select %p223, %s222, 31
      %s225 = smul.addr %s224, 8
      %s226 = scalar_lea.vmem %s5, %s225
      %s227 = smul.u32 16, %s16
      %v229 = vld [vmem:[%s220] sm:$0xff]
      %v230 = vld [vmem:[%s220 + $0x8] sm:$0xff]
      %v231 = vld [vmem:[%s220 + $0x10] sm:$0xff]
      %v232 = vld [vmem:[%s220 + $0x18] sm:$0xff]
      %v233 = vld [vmem:[%s220 + $0x20] sm:$0xff]
      %v234 = vld [vmem:[%s220 + $0x28] sm:$0xff]
      %v235 = vld [vmem:[%s220 + $0x30] sm:$0xff]
      %v236 = vld [vmem:[%s220 + $0x38] sm:$0xff]
      %v237 = vld [vmem:[%s220 + $0x40] sm:$0xff]
      %v238 = vld [vmem:[%s220 + $0x48] sm:$0xff]
      %v239 = vld [vmem:[%s220 + $0x50] sm:$0xff]
      %v240 = vld [vmem:[%s220 + $0x58] sm:$0xff]
      %v241 = vld [vmem:[%s220 + $0x60] sm:$0xff]
      %v242 = vld [vmem:[%s220 + $0x68] sm:$0xff]
      %v243 = vld [vmem:[%s220 + $0x70] sm:$0xff]
      %v244 = vld [vmem:[%s220 + $0x78] sm:$0xff]
      %v245 = vpack.c.bf16 %v230, %v229
      %v246 = vpack.c.bf16 %v232, %v231
      %v247 = vpack.c.bf16 %v234, %v233
      %v248 = vpack.c.bf16 %v236, %v235
      %v249 = vpack.c.bf16 %v238, %v237
      %v250 = vpack.c.bf16 %v240, %v239
      %v251 = vpack.c.bf16 %v242, %v241
      %v252 = vpack.c.bf16 %v244, %v243
      %v253 = vld [vmem:[%s4] sm:$0xff]
      %v254 = vld [vmem:[%s1] sm:$0xf]
      %v255 = vld [vmem:[%s1 + $0x4] sm:$0xf]
      %v256 = vperm.slane %v253, 0
      %v259 = vunpack.c.l.b16 %v254
      %v260 = vunpack.c.l.b16 %v255
      %v261 = vpack.c.b16 %v260, %v259
      %vm263 = vcmask 130048
      %v265 = vsel %vm263, %v245, 0
      %v268 = vsel %vm263, %v246, 0
      %v271 = vsel %vm263, %v247, 0
      %v274 = vsel %vm263, %v248, 0
      %v277 = vsel %vm263, %v249, 0
      %v280 = vsel %vm263, %v250, 0
      %v283 = vsel %vm263, %v251, 0
      %v286 = vsel %vm263, %v252, 0
      %288 = vmatpush.bf16.msra.mxu0 0
      %289 = vmatpush.bf16.msra.mxu0 0
      %290 = vmatpush.bf16.msra.mxu0 0
      %291 = vmatpush.bf16.msra.mxu0 0
      %292 = vmatpush.bf16.msra.mxu0 0
      %293 = vmatpush.bf16.msra.mxu0 0
      %294 = vmatpush.bf16.msra.mxu0 0
      %295 = vmatpush.bf16.msra.mxu0 %v261
      %296 = vmatmul.bf16.gmra.mxu0 %v265
      %v297 = vpop.f32.mrf.mxu0
      %v298 = vadd.f32 %v256, %v297
      %v299 = vpop.f32.mrf.mxu0
      %v300 = vadd.f32 %v256, %v299
      %301 = vmatmul.bf16.gmra.mxu0 %v268
      %v302 = vpop.f32.mrf.mxu0
      %v303 = vadd.f32 %v256, %v302
      %v304 = vpop.f32.mrf.mxu0
      %v305 = vadd.f32 %v256, %v304
      %306 = vmatmul.bf16.gmra.mxu0 %v271
      %v307 = vpop.f32.mrf.mxu0
      %v308 = vadd.f32 %v256, %v307
      %v309 = vpop.f32.mrf.mxu0
      %v310 = vadd.f32 %v256, %v309
      %311 = vmatmul.bf16.gmra.mxu0 %v274
      %v312 = vpop.f32.mrf.mxu0
      %v313 = vadd.f32 %v256, %v312
      %v314 = vpop.f32.mrf.mxu0
      %v315 = vadd.f32 %v256, %v314
      %316 = vmatmul.bf16.gmra.mxu0 %v277
      %v317 = vpop.f32.mrf.mxu0
      %v318 = vadd.f32 %v256, %v317
      %v319 = vpop.f32.mrf.mxu0
      %v320 = vadd.f32 %v256, %v319
      %321 = vmatmul.bf16.gmra.mxu0 %v280
      %v322 = vpop.f32.mrf.mxu0
      %v323 = vadd.f32 %v256, %v322
      %v324 = vpop.f32.mrf.mxu0
      %v325 = vadd.f32 %v256, %v324
      %326 = vmatmul.bf16.gmra.mxu0 %v283
      %v327 = vpop.f32.mrf.mxu0
      %v328 = vadd.f32 %v256, %v327
      %v329 = vpop.f32.mrf.mxu0
      %v330 = vadd.f32 %v256, %v329
      %331 = vmatmul.bf16.gmra.mxu0 %v286
      %v332 = vpop.f32.mrf.mxu0
      %v333 = vadd.f32 %v256, %v332
      %v334 = vpop.f32.mrf.mxu0
      %v335 = vadd.f32 %v256, %v334
      %336 = vdwg.mxu0
      %v337 = vmax.f32 %v298, 0.0
      %v338 = vmax.f32 %v300, 0.0
      %v339 = vmax.f32 %v303, 0.0
      %v340 = vmax.f32 %v305, 0.0
      %v341 = vmax.f32 %v308, 0.0
      %v342 = vmax.f32 %v310, 0.0
      %v343 = vmax.f32 %v313, 0.0
      %v344 = vmax.f32 %v315, 0.0
      %v345 = vmax.f32 %v318, 0.0
      %v346 = vmax.f32 %v320, 0.0
      %v347 = vmax.f32 %v323, 0.0
      %v348 = vmax.f32 %v325, 0.0
      %v349 = vmax.f32 %v328, 0.0
      %v350 = vmax.f32 %v330, 0.0
      %v351 = vmax.f32 %v333, 0.0
      %v352 = vmax.f32 %v335, 0.0
      %v353 = vpack.c.bf16 %v338, %v337
      %v354 = vpack.c.bf16 %v340, %v339
      %v355 = vpack.c.bf16 %v342, %v341
      %v356 = vpack.c.bf16 %v344, %v343
      %v357 = vpack.c.bf16 %v346, %v345
      %v358 = vpack.c.bf16 %v348, %v347
      %v359 = vpack.c.bf16 %v350, %v349
      %v360 = vpack.c.bf16 %v352, %v351
      %v361 = vld [vmem:[%s2] sm:$0xf]
      %v362 = vld [vmem:[%s2 + $0x4] sm:$0xf]
      %v363 = vld [vmem:[%s2 + $0x8] sm:$0xf]
      %v364 = vld [vmem:[%s2 + $0xc] sm:$0xf]
      %v365 = vld [vmem:[%s2 + $0x10] sm:$0xf]
      %v366 = vld [vmem:[%s2 + $0x14] sm:$0xf]
      %v367 = vld [vmem:[%s2 + $0x18] sm:$0xf]
      %v368 = vld [vmem:[%s2 + $0x1c] sm:$0xf]
      %v369 = vld [vmem:[%s2 + $0x20] sm:$0xf]
      %v370 = vld [vmem:[%s2 + $0x24] sm:$0xf]
      %v371 = vld [vmem:[%s2 + $0x28] sm:$0xf]
      %v372 = vld [vmem:[%s2 + $0x2c] sm:$0xf]
      %v373 = vld [vmem:[%s2 + $0x30] sm:$0xf]
      %v374 = vld [vmem:[%s2 + $0x34] sm:$0xf]
      %v375 = vld [vmem:[%s2 + $0x38] sm:$0xf]
      %v376 = vld [vmem:[%s2 + $0x3c] sm:$0xf]
      %v377 = vperm.slane %v253, 1
      %v394 = vunpack.c.l.b16 %v361
      %v395 = vunpack.c.l.b16 %v362
      %v396 = vunpack.c.l.b16 %v363
      %v397 = vunpack.c.l.b16 %v364
      %v398 = vunpack.c.l.b16 %v365
      %v399 = vunpack.c.l.b16 %v366
      %v400 = vunpack.c.l.b16 %v367
      %v401 = vunpack.c.l.b16 %v368
      %v402 = vunpack.c.l.b16 %v369
      %v403 = vunpack.c.l.b16 %v370
      %v404 = vunpack.c.l.b16 %v371
      %v405 = vunpack.c.l.b16 %v372
      %v406 = vunpack.c.l.b16 %v373
      %v407 = vunpack.c.l.b16 %v374
      %v408 = vunpack.c.l.b16 %v375
      %v409 = vunpack.c.l.b16 %v376
      %v410 = vpack.c.b16 %v395, %v394
      %v411 = vpack.c.b16 %v397, %v396
      %v412 = vpack.c.b16 %v399, %v398
      %v413 = vpack.c.b16 %v401, %v400
      %v414 = vpack.c.b16 %v403, %v402
      %v415 = vpack.c.b16 %v405, %v404
      %v416 = vpack.c.b16 %v407, %v406
      %v417 = vpack.c.b16 %v409, %v408
      %426 = vmatpush.bf16.msra.mxu0 %v417
      %427 = vmatpush.bf16.msra.mxu0 %v416
      %428 = vmatpush.bf16.msra.mxu0 %v415
      %429 = vmatpush.bf16.msra.mxu0 %v414
      %430 = vmatpush.bf16.msra.mxu0 %v413
      %431 = vmatpush.bf16.msra.mxu0 %v412
      %432 = vmatpush.bf16.msra.mxu0 %v411
      %433 = vmatpush.bf16.msra.mxu0 %v410
      %434 = vmatmul.bf16.gmra.mxu0 %v353
      %v435 = vpop.f32.mrf.mxu0
      %v436 = vadd.f32 %v377, %v435
      %v437 = vpop.f32.mrf.mxu0
      %v438 = vadd.f32 %v377, %v437
      %439 = vmatmul.bf16.gmra.mxu0 %v354
      %v440 = vpop.f32.mrf.mxu0
      %v441 = vadd.f32 %v377, %v440
      %v442 = vpop.f32.mrf.mxu0
      %v443 = vadd.f32 %v377, %v442
      %444 = vmatmul.bf16.gmra.mxu0 %v355
      %v445 = vpop.f32.mrf.mxu0
      %v446 = vadd.f32 %v377, %v445
      %v447 = vpop.f32.mrf.mxu0
      %v448 = vadd.f32 %v377, %v447
      %449 = vmatmul.bf16.gmra.mxu0 %v356
      %v450 = vpop.f32.mrf.mxu0
      %v451 = vadd.f32 %v377, %v450
      %v452 = vpop.f32.mrf.mxu0
      %v453 = vadd.f32 %v377, %v452
      %454 = vmatmul.bf16.gmra.mxu0 %v357
      %v455 = vpop.f32.mrf.mxu0
      %v456 = vadd.f32 %v377, %v455
      %v457 = vpop.f32.mrf.mxu0
      %v458 = vadd.f32 %v377, %v457
      %459 = vmatmul.bf16.gmra.mxu0 %v358
      %v460 = vpop.f32.mrf.mxu0
      %v461 = vadd.f32 %v377, %v460
      %v462 = vpop.f32.mrf.mxu0
      %v463 = vadd.f32 %v377, %v462
      %464 = vmatmul.bf16.gmra.mxu0 %v359
      %v465 = vpop.f32.mrf.mxu0
      %v466 = vadd.f32 %v377, %v465
      %v467 = vpop.f32.mrf.mxu0
      %v468 = vadd.f32 %v377, %v467
      %469 = vmatmul.bf16.gmra.mxu0 %v360
      %v470 = vpop.f32.mrf.mxu0
      %v471 = vadd.f32 %v377, %v470
      %v472 = vpop.f32.mrf.mxu0
      %v473 = vadd.f32 %v377, %v472
      %474 = vdwg.mxu0
      %v475 = vmax.f32 %v436, 0.0
      %v476 = vmax.f32 %v438, 0.0
      %v477 = vmax.f32 %v441, 0.0
      %v478 = vmax.f32 %v443, 0.0
      %v479 = vmax.f32 %v446, 0.0
      %v480 = vmax.f32 %v448, 0.0
      %v481 = vmax.f32 %v451, 0.0
      %v482 = vmax.f32 %v453, 0.0
      %v483 = vmax.f32 %v456, 0.0
      %v484 = vmax.f32 %v458, 0.0
      %v485 = vmax.f32 %v461, 0.0
      %v486 = vmax.f32 %v463, 0.0
      %v487 = vmax.f32 %v466, 0.0
      %v488 = vmax.f32 %v468, 0.0
      %v489 = vmax.f32 %v471, 0.0
      %v490 = vmax.f32 %v473, 0.0
      %v491 = vpack.c.bf16 %v476, %v475
      %v492 = vpack.c.bf16 %v478, %v477
      %v493 = vpack.c.bf16 %v480, %v479
      %v494 = vpack.c.bf16 %v482, %v481
      %v495 = vpack.c.bf16 %v484, %v483
      %v496 = vpack.c.bf16 %v486, %v485
      %v497 = vpack.c.bf16 %v488, %v487
      %v498 = vpack.c.bf16 %v490, %v489
      %v499 = vld [vmem:[%s3] sm:$0xf]
      %v500 = vld [vmem:[%s3 + $0x4] sm:$0xf]
      %v501 = vld [vmem:[%s3 + $0x8] sm:$0xf]
      %v502 = vld [vmem:[%s3 + $0xc] sm:$0xf]
      %v503 = vld [vmem:[%s3 + $0x10] sm:$0xf]
      %v504 = vld [vmem:[%s3 + $0x14] sm:$0xf]
      %v505 = vld [vmem:[%s3 + $0x18] sm:$0xf]
      %v506 = vld [vmem:[%s3 + $0x1c] sm:$0xf]
      %v507 = vld [vmem:[%s3 + $0x20] sm:$0xf]
      %v508 = vld [vmem:[%s3 + $0x24] sm:$0xf]
      %v509 = vld [vmem:[%s3 + $0x28] sm:$0xf]
      %v510 = vld [vmem:[%s3 + $0x2c] sm:$0xf]
      %v511 = vld [vmem:[%s3 + $0x30] sm:$0xf]
      %v512 = vld [vmem:[%s3 + $0x34] sm:$0xf]
      %v513 = vld [vmem:[%s3 + $0x38] sm:$0xf]
      %v514 = vld [vmem:[%s3 + $0x3c] sm:$0xf]
      %v515 = vperm.slane %v253, 2
      %v532 = vunpack.c.l.b16 %v499
      %v533 = vunpack.c.l.b16 %v500
      %v534 = vunpack.c.l.b16 %v501
      %v535 = vunpack.c.l.b16 %v502
      %v536 = vunpack.c.l.b16 %v503
      %v537 = vunpack.c.l.b16 %v504
      %v538 = vunpack.c.l.b16 %v505
      %v539 = vunpack.c.l.b16 %v506
      %v540 = vunpack.c.l.b16 %v507
      %v541 = vunpack.c.l.b16 %v508
      %v542 = vunpack.c.l.b16 %v509
      %v543 = vunpack.c.l.b16 %v510
      %v544 = vunpack.c.l.b16 %v511
      %v545 = vunpack.c.l.b16 %v512
      %v546 = vunpack.c.l.b16 %v513
      %v547 = vunpack.c.l.b16 %v514
      %v548 = vpack.c.b16 %v533, %v532
      %v549 = vpack.c.b16 %v535, %v534
      %v550 = vpack.c.b16 %v537, %v536
      %v551 = vpack.c.b16 %v539, %v538
      %v552 = vpack.c.b16 %v541, %v540
      %v553 = vpack.c.b16 %v543, %v542
      %v554 = vpack.c.b16 %v545, %v544
      %v555 = vpack.c.b16 %v547, %v546
      %564 = vmatpush.bf16.msra.mxu0 %v555
      %565 = vmatpush.bf16.msra.mxu0 %v554
      %566 = vmatpush.bf16.msra.mxu0 %v553
      %567 = vmatpush.bf16.msra.mxu0 %v552
      %568 = vmatpush.bf16.msra.mxu0 %v551
      %569 = vmatpush.bf16.msra.mxu0 %v550
      %570 = vmatpush.bf16.msra.mxu0 %v549
      %571 = vmatpush.bf16.msra.mxu0 %v548
      %572 = vmatmul.bf16.gmra.mxu0 %v491
      %v573 = vpop.f32.mrf.mxu0
      %v574 = vadd.f32 %v515, %v573
      %v575 = vpop.f32.mrf.mxu0
      %v576 = vadd.f32 %v515, %v575
      %577 = vmatmul.bf16.gmra.mxu0 %v492
      %v578 = vpop.f32.mrf.mxu0
      %v579 = vadd.f32 %v515, %v578
      %v580 = vpop.f32.mrf.mxu0
      %v581 = vadd.f32 %v515, %v580
      %582 = vmatmul.bf16.gmra.mxu0 %v493
      %v583 = vpop.f32.mrf.mxu0
      %v584 = vadd.f32 %v515, %v583
      %v585 = vpop.f32.mrf.mxu0
      %v586 = vadd.f32 %v515, %v585
      %587 = vmatmul.bf16.gmra.mxu0 %v494
      %v588 = vpop.f32.mrf.mxu0
      %v589 = vadd.f32 %v515, %v588
      %v590 = vpop.f32.mrf.mxu0
      %v591 = vadd.f32 %v515, %v590
      %592 = vmatmul.bf16.gmra.mxu0 %v495
      %v593 = vpop.f32.mrf.mxu0
      %v594 = vadd.f32 %v515, %v593
      %v595 = vpop.f32.mrf.mxu0
      %v596 = vadd.f32 %v515, %v595
      %597 = vmatmul.bf16.gmra.mxu0 %v496
      %v598 = vpop.f32.mrf.mxu0
      %v599 = vadd.f32 %v515, %v598
      %v600 = vpop.f32.mrf.mxu0
      %v601 = vadd.f32 %v515, %v600
      %602 = vmatmul.bf16.gmra.mxu0 %v497
      %v603 = vpop.f32.mrf.mxu0
      %v604 = vadd.f32 %v515, %v603
      %v605 = vpop.f32.mrf.mxu0
      %v606 = vadd.f32 %v515, %v605
      %607 = vmatmul.bf16.gmra.mxu0 %v498
      %v608 = vpop.f32.mrf.mxu0
      %v609 = vadd.f32 %v515, %v608
      %v610 = vpop.f32.mrf.mxu0
      %v611 = vadd.f32 %v515, %v610
      %612 = vdwg.mxu0
      %vm613 = vcmask 31744
      %614 = vst.msk [vmem:[%s226] sm:$0xff] %vm613, %v574
      %615 = vst.msk [vmem:[%s226 + $0x8] sm:$0xff] %vm613, %v576
      %616 = vst.msk [vmem:[%s226 + $0x10] sm:$0xff] %vm613, %v579
      %617 = vst.msk [vmem:[%s226 + $0x18] sm:$0xff] %vm613, %v581
      %618 = vst.msk [vmem:[%s226 + $0x20] sm:$0xff] %vm613, %v584
      %619 = vst.msk [vmem:[%s226 + $0x28] sm:$0xff] %vm613, %v586
      %620 = vst.msk [vmem:[%s226 + $0x30] sm:$0xff] %vm613, %v589
      %621 = vst.msk [vmem:[%s226 + $0x38] sm:$0xff] %vm613, %v591
      %622 = vst.msk [vmem:[%s226 + $0x40] sm:$0xff] %vm613, %v594
      %623 = vst.msk [vmem:[%s226 + $0x48] sm:$0xff] %vm613, %v596
      %624 = vst.msk [vmem:[%s226 + $0x50] sm:$0xff] %vm613, %v599
      %625 = vst.msk [vmem:[%s226 + $0x58] sm:$0xff] %vm613, %v601
      %626 = vst.msk [vmem:[%s226 + $0x60] sm:$0xff] %vm613, %v604
      %627 = vst.msk [vmem:[%s226 + $0x68] sm:$0xff] %vm613, %v606
      %628 = vst.msk [vmem:[%s226 + $0x70] sm:$0xff] %vm613, %v609
      %629 = vst.msk [vmem:[%s226 + $0x78] sm:$0xff] %vm613, %v611
      %s630 = smul.u32 16, %s16
      %p631 = scmp.lt.s32.totalorder %s630, 31
      %s632 = scalar_select %p631, %s630, 31
      %s633 = smul.addr %s632, 8
      %s634 = scalar_lea.vmem %s5, %s633
      // Predicated region
      $region41: #{tpu_custom_call.1} parent=39 // pred_check
        %p635 = pneg %p144
      $region42: #{tpu_custom_call.1} parent=39 // pred_check_branch
        %637 = sbr.rel (%p635) target = $region44
      $region43: #{tpu_custom_call.1} parent=39 // pred_region
        %s638 = smul.u32 16, %s16
      $region44: #{tpu_custom_call.1} parent=39 // pred_fallthru
        _
    $region40: #{tpu_custom_call.1} parent=5 // pred_fallthru
      _
    %p639 = scmp.le.s32.totalorder 2, %s11
    // Predicated region
    $region45: #{tpu_custom_call.1} parent=5 // pred_check
      %p640 = pneg %p639
    $region46: #{tpu_custom_call.1} parent=5 // pred_check_branch
      %642 = sbr.rel (%p640) target = $region48
    $region47: #{tpu_custom_call.1} parent=5 // pred_region
      %s643 = ssub.s32 %s11, 2
      // Predicated region
      $region49: #{tpu_custom_call.1} parent=47 // pred_check
        %p644 = pneg %p150
      $region50: #{tpu_custom_call.1} parent=47 // pred_check_branch
        %646 = sbr.rel (%p644) target = $region52
      $region51: #{tpu_custom_call.1} parent=47 // pred_region
        %s647 = smul.u32 16, %s17
        %p648 = scmp.lt.s32.totalorder %s647, 31
        %s649 = scalar_select %p648, %s647, 31
        %s650 = smul.addr %s649, 8
        %s651 = scalar_lea.vmem %s5, %s650
      $region52: #{tpu_custom_call.1} parent=47 // pred_fallthru
        _
    $region48: #{tpu_custom_call.1} parent=5 // pred_fallthru
      _
  $region6: #{tpu_custom_call.1} parent=0 // loop_footer
    %s15 = sadd.s32 1, %s11
  $region7: #{tpu_custom_call.1} parent=0 // loop_footer_branch
    %10 = sbr.rel target = $region3
  $region8: #{tpu_custom_call.1} parent=0 // loop_exit
    _

</llo_original>
